<compile_context>
chip_gen: v6e
topology: v6e:2x2x1
jax: 0.10.0
libtpu: 0.0.40
codegen_flags: <defaults>
</compile_context>

<pallas_src>
import functools
import math

import jax
import jax.numpy as jnp
from jax.experimental import pallas as pl
from jax.experimental.pallas import tpu as pltpu

_NEG_INF = -1e30


# --------------------------------------------------------------------------
# Kernel bodies
# --------------------------------------------------------------------------
def _init_state(q_ref, q_sc, m_sc, l_sc, acc_sc, *, scale, H, D):
    """Reset online-softmax state and stage the pre-scaled query tile."""
    m_sc[...] = jnp.full_like(m_sc, _NEG_INF)
    l_sc[...] = jnp.zeros_like(l_sc)
    acc_sc[...] = jnp.zeros_like(acc_sc)
    # Hoist the softmax scale: scale q once per q tile, reused on every kv step.
    for h in range(H):
        q_sc[h] = (q_ref[0, :, h * D:(h + 1) * D] * scale).astype(q_sc.dtype)


def _attn_step(kv_ref, q_sc, m_sc, l_sc, acc_sc, *, qi, ki, masked, causal,
               kv_tail, S_valid, tq, tk, H, D):
    """One (q-tile, kv-tile) online-softmax update over all heads."""
    HD = H * D
    if masked:
        col = ki * tk + jax.lax.broadcasted_iota(jnp.int32, (tq, tk), 1)
        mask = None
        if causal:
            row = qi * tq + jax.lax.broadcasted_iota(jnp.int32, (tq, tk), 0)
            mask = col <= row
        if kv_tail:
            key_ok = col < S_valid
            mask = key_ok if mask is None else jnp.logical_and(mask, key_ok)
        assert mask is not None

    # TODO(synk): for H >= 8 and D % 128 == 0 switch to a lax.fori_loop over
    # heads (128-aligned pl.ds lane slices) to bound vreg live ranges.
    for h in range(H):
        q_h = q_sc[h]                                      # (tq, D) bf16
        k_h = kv_ref[0, :, h * D:(h + 1) * D]              # (tk, D) bf16
        v_h = kv_ref[0, :, HD + h * D:HD + (h + 1) * D]    # (tk, D) bf16
        # bf16 x bf16 -> f32 on the MXU, contracting D (no K transpose).
        s = jax.lax.dot_general(q_h, k_h, (((1,), (1,)), ((), ())),
                                preferred_element_type=jnp.float32)
        if masked:
            s = jnp.where(mask, s, _NEG_INF)
        m_prev = m_sc[h]                                   # (tq, 1) f32
        m_new = jnp.maximum(m_prev, jnp.max(s, axis=-1, keepdims=True))
        alpha = jnp.exp(m_prev - m_new)                    # (tq, 1) f32
        # f32 exp on the EUP (free slot).  Masked scores (-1e30) underflow to
        # exactly 0 because m_new is finite for every row: kv block 0 is
        # always processed first and always has at least one unmasked column
        # per row (col 0 <= row and col 0 < S_valid).  Hence no second mask on
        # p is needed, and no (tq, tk) dtype casts around the exp.
        p = jnp.exp(s - m_new)                             # (tq, tk) f32
        l_sc[h] = alpha * l_sc[h] + jnp.sum(p, axis=-1, keepdims=True)
        acc_sc[h] = alpha * acc_sc[h] + jax.lax.dot_general(
            p.astype(jnp.bfloat16), v_h, (((1,), (0,)), ((), ())),
            preferred_element_type=jnp.float32)            # (tq, D) f32
        m_sc[h] = m_new


def _finalize(o_ref, l_sc, acc_sc, *, H, D):
    for h in range(H):
        inv_l = pl.reciprocal(l_sc[h], approx=True)        # (tq, 1)
        o_ref[0, :, h * D:(h + 1) * D] = (acc_sc[h] * inv_l).astype(o_ref.dtype)


def _dense_kernel(q_ref, kv_ref, o_ref, q_sc, m_sc, l_sc, acc_sc, *,
                  scale, tq, tk, H, D, n_k, kv_tail, S_valid):
    """Non-causal: rectangular grid (B, T/tq, S/tk); last axis is the reduction."""
    qi = pl.program_id(1)
    ki = pl.program_id(2)

    @pl.when(ki == 0)
    def _():
        _init_state(q_ref, q_sc, m_sc, l_sc, acc_sc, scale=scale, H=H, D=D)

    step = functools.partial(_attn_step, kv_ref, q_sc, m_sc, l_sc, acc_sc,
                             qi=qi, ki=ki, causal=False, kv_tail=kv_tail,
                             S_valid=S_valid, tq=tq, tk=tk, H=H, D=D)
    if kv_tail:
        @pl.when(ki == n_k - 1)
        def _():
            step(masked=True)          # mask padded key columns

        @pl.when(ki != n_k - 1)
        def _():
            step(masked=False)
    else:
        step(masked=False)

    @pl.when(ki == n_k - 1)
    def _():
        _finalize(o_ref, l_sc, acc_sc, H=H, D=D)


def _causal_kernel(qi_tbl, ki_tbl, q_ref, kv_ref, o_ref, q_sc, m_sc, l_sc,
                   acc_sc, *, scale, tq, tk, H, D, n_k, kv_tail, S_valid):
    """Causal: compacted schedule of needed blocks, grid (B, n_steps).

    qi_tbl / ki_tbl are scalar-prefetched SMEM tables mapping flat step ->
    (q block, kv block).  For each qi the kv blocks run in order 0..last, so
    the finite-m invariant used by _attn_step still holds.
    """
    step_i = pl.program_id(1)
    qi = qi_tbl[step_i]
    ki = ki_tbl[step_i]

    @pl.when(ki == 0)
    def _():
        _init_state(q_ref, q_sc, m_sc, l_sc, acc_sc, scale=scale, H=H, D=D)

    step = functools.partial(_attn_step, kv_ref, q_sc, m_sc, l_sc, acc_sc,
                             qi=qi, ki=ki, causal=True, kv_tail=kv_tail,
                             S_valid=S_valid, tq=tq, tk=tk, H=H, D=D)
    # Only diagonal-straddling blocks need the causal mask (fully-masked blocks
    # never appear in the schedule); tail blocks also mask padded key columns.
    straddles = (ki * tk + (tk - 1)) > (qi * tq)
    need_mask = jnp.logical_or(straddles, ki == n_k - 1) if kv_tail else straddles

    @pl.when(need_mask)
    def _():
        step(masked=True)

    @pl.when(jnp.logical_not(need_mask))
    def _():
        step(masked=False)

    last_ki = jnp.minimum((qi * tq + (tq - 1)) // tk, n_k - 1)

    @pl.when(ki == last_ki)
    def _():
        _finalize(o_ref, l_sc, acc_sc, H=H, D=D)


# --------------------------------------------------------------------------
# Wrapper: tiling / VMEM budgeting / padding / schedules
# --------------------------------------------------------------------------
def _round_up(n, m):
    return ((n + m - 1) // m) * m


def _pick_tile(n, cap):
    """Sequence tile: multiple of 8, <= cap, minimizing padding of n
    (prefer exact divisors of the 8-padded length, then larger tiles)."""
    cap = max(8, (cap // 8) * 8)
    n8 = _round_up(n, 8)
    if n8 <= cap:
        return n8
    for t in range(cap, 7, -8):
        if n8 % t == 0:
            return t
    best_t, best_pad = cap, _round_up(n8, cap) - n8
    for t in range(cap, max(cap // 2, 8) - 1, -8):
        pad = _round_up(n8, t) - n8
        if pad < best_pad:
            best_t, best_pad = t, pad
    return best_t


def _device_info():
    kind = ""
    try:
        kind = jax.devices()[0].device_kind.lower()
    except Exception:
        pass
    vmem = None
    try:
        vmem = int(pltpu.get_tpu_info().vmem_capacity_bytes)
    except Exception:
        vmem = None
    if vmem is None:
        vmem = 64 * 2**20 if "v7" in kind else 128 * 2**20
    return kind, vmem


def _vmem_usage(tq, tk, H, D, kv_bufs):
    HD = H * D
    return (2 * tq * HD * 2                # q blocks (bf16, double-buffered)
            + kv_bufs * tk * 2 * HD * 2    # kv blocks (bf16)
            + 2 * tq * HD * 4              # out blocks (f32, double-buffered)
            + tq * HD * 2                  # q_sc scratch (bf16)
            + tq * HD * 4                  # acc scratch (f32)
            + 2 * H * tq * 128 * 4         # m, l scratch (lane-padded f32)
            + 3 * tq * tk * 4)             # live s/p f32 temporaries


def flash_attention(q, kv, softmax_scale=None, causal=False,
                    key_padding_mask=None):
    """Mirror of FlashAttention.forward (key_padding_mask=None path).

    q : (B, T, H, D)  bf16/fp16
    kv: (B, S, 2, H, D) bf16/fp16
    returns (out, None) with out (B, T, H, D) float32 (out_fp32 semantics).
    """
    assert q.dtype in (jnp.bfloat16, jnp.float16)
    assert kv.dtype in (jnp.bfloat16, jnp.float16)
    # TODO(synk): variable-length (key_padding_mask / cu_seqlens) path.
    assert key_padding_mask is None, "padded path not implemented"
    B, T, H, D = q.shape
    S = kv.shape[1]
    assert kv.shape == (B, S, 2, H, D)

    # MXU consumes bf16 natively; fp16 inputs are cast once here.
    if q.dtype != jnp.bfloat16:
        q = q.astype(jnp.bfloat16)
    if kv.dtype != jnp.bfloat16:
        kv = kv.astype(jnp.bfloat16)

    scale = softmax_scale if softmax_scale is not None else 1.0 / math.sqrt(D)
    HD = H * D

    # Free reshapes only (no transpose, no extra HBM traffic).
    q3 = q.reshape(B, T, HD)
    kv3 = kv.reshape(B, S, 2 * HD)

    kind, vmem_bytes = _device_info()
    small_vmem = vmem_bytes <= 96 * 2**20          # v7x: 64 MiB per TensorCore
    kv_bufs = 3 if "v5" in kind else 2             # deeper kv pipeline on v5

    # Generation-aware caps: bigger q tiles raise KV arithmetic intensity on
    # 128-MiB-VMEM parts; keep headroom on v7x / very wide packed heads.
    cap_q = 256 if (small_vmem or HD >= 4096) else 512
    cap_k = 256 if (small_vmem and HD >= 4096) else 512
    tq = _pick_tile(T, cap_q)
    tk = _pick_tile(S, cap_k)

    # v7x has 2 TensorCores: give both work when the batch axis can't.
    if "v7" in kind and B == 1 and _round_up(T, tq) // tq < 2 and T > 16:
        tq = _pick_tile(T, _round_up(T, 8) // 2)

    # Shrink tiles until the estimate fits in ~75% of physical VMEM.
    budget = int(0.75 * vmem_bytes)
    while _vmem_usage(tq, tk, H, D, kv_bufs) > budget and tk > 128:
        tk = _pick_tile(S, max(128, tk // 2))
    while _vmem_usage(tq, tk, H, D, kv_bufs) > budget and tq > 128:
        tq = _pick_tile(T, max(128, tq // 2))

    # Pad ragged sequence lengths up to the tile size (padded key columns are
    # masked in-kernel; padded query rows are sliced off the output).
    T_pad = _round_up(T, tq)
    S_pad = _round_up(S, tk)
    if T_pad != T:
        q3 = jnp.pad(q3, ((0, 0), (0, T_pad - T), (0, 0)))
    if S_pad != S:
        kv3 = jnp.pad(kv3, ((0, 0), (0, S_pad - S), (0, 0)))
    n_q, n_k = T_pad // tq, S_pad // tk
    kv_tail = S_pad != S

    usage = _vmem_usage(tq, tk, H, D, kv_bufs)
    vmem_limit = int(min(0.8 * vmem_bytes, max(32 * 2**20, 1.5 * usage)))

    scratch_shapes = [
        pltpu.VMEM((H, tq, D), jnp.bfloat16),   # pre-scaled q
        pltpu.VMEM((H, tq, 1), jnp.float32),    # running max m
        pltpu.VMEM((H, tq, 1), jnp.float32),    # running denominator l
        pltpu.VMEM((H, tq, D), jnp.float32),    # output accumulator
    ]
    kv_kwargs = dict(pipeline_mode=pl.Buffered(kv_bufs)) if kv_bufs != 2 else {}
    out_shape = jax.ShapeDtypeStruct((B, T_pad, HD), jnp.float32)
    params = dict(scale=scale, tq=tq, tk=tk, H=H, D=D, n_k=n_k,
                  kv_tail=kv_tail, S_valid=S)

    if causal:
        # Compacted schedule: enumerate only (qi, ki) blocks on/below the
        # diagonal.  Fully-masked blocks never become grid steps, so neither
        # their per-step overhead nor their DMAs are paid; kv blocks per qi
        # still run in order 0..last (finite-m invariant).
        qi_l, ki_l = [], []
        for qb in range(n_q):
            last = min((qb * tq + tq - 1) // tk, n_k - 1)
            for kb in range(last + 1):
                qi_l.append(qb)
                ki_l.append(kb)
        qi_tbl = jnp.asarray(qi_l, dtype=jnp.int32)
        ki_tbl = jnp.asarray(ki_l, dtype=jnp.int32)

        out3 = pl.pallas_call(
            functools.partial(_causal_kernel, **params),
            out_shape=out_shape,
            grid_spec=pltpu.PrefetchScalarGridSpec(
                num_scalar_prefetch=2,
                grid=(B, len(qi_l)),
                in_specs=[
                    pl.BlockSpec((1, tq, HD),
                                 lambda b, s, qt, kt: (b, qt[s], 0)),
                    pl.BlockSpec((1, tk, 2 * HD),
                                 lambda b, s, qt, kt: (b, kt[s], 0),
                                 **kv_kwargs),
                ],
                out_specs=pl.BlockSpec((1, tq, HD),
                                       lambda b, s, qt, kt: (b, qt[s], 0)),
                scratch_shapes=scratch_shapes),
            compiler_params=pltpu.CompilerParams(
                dimension_semantics=("parallel", "arbitrary"),
                vmem_limit_bytes=vmem_limit),
        )(qi_tbl, ki_tbl, q3, kv3)
    else:
        out3 = pl.pallas_call(
            functools.partial(_dense_kernel, **params),
            out_shape=out_shape,
            grid_spec=pltpu.PrefetchScalarGridSpec(
                num_scalar_prefetch=0,
                grid=(B, n_q, n_k),
                in_specs=[
                    pl.BlockSpec((1, tq, HD), lambda b, i, k: (b, i, 0)),
                    pl.BlockSpec((1, tk, 2 * HD), lambda b, i, k: (b, k, 0),
                                 **kv_kwargs),
                ],
                out_specs=pl.BlockSpec((1, tq, HD), lambda b, i, k: (b, i, 0)),
                scratch_shapes=scratch_shapes),
            compiler_params=pltpu.CompilerParams(
                dimension_semantics=("parallel", "parallel", "arbitrary"),
                vmem_limit_bytes=vmem_limit),
        )(q3, kv3)

    out = out3[:, :T].reshape(B, T, H, D)   # drop padded rows; f32 (out_fp32)
    return out, None


# --------------------------------------------------------------------------
# Reference + self-test
# --------------------------------------------------------------------------
def _reference(q, kv, softmax_scale=None, causal=False):
    B, T, H, D = q.shape
    scale = softmax_scale if softmax_scale is not None else 1.0 / math.sqrt(D)
    qf = q.astype(jnp.float32)
    kf = kv[:, :, 0].astype(jnp.float32)
    vf = kv[:, :, 1].astype(jnp.float32)
    s = jnp.einsum('bthd,bshd->bhts', qf, kf) * scale
    if causal:
        S = kv.shape[1]
        mask = jnp.arange(S)[None, :] <= jnp.arange(T)[:, None]
        s = jnp.where(mask[None, None], s, -jnp.inf)
    p = jax.nn.softmax(s, axis=-1)
    return jnp.einsum('bhts,bshd->bthd', p, vf)


def _check(q, kv, causal):
    out, _ = flash_attention(q, kv, causal=causal)
    out = jax.block_until_ready(out)
    assert out.shape == q.shape and out.dtype == jnp.float32
    ref = _reference(q, kv, causal=causal)
    err = float(jnp.max(jnp.abs(out - ref)))
    assert jnp.allclose(out, ref, atol=5e-2, rtol=5e-2), err


if __name__ == "__main__":
    key = jax.random.PRNGKey(0)

    # 1) Small non-causal case (module layout (B, T, H, D) / (B, S, 2, H, D)).
    k1, k2, key = jax.random.split(key, 3)
    q = jax.random.normal(k1, (2, 8, 2, 32), dtype=jnp.bfloat16)
    kv = jax.random.normal(k2, (2, 8, 2, 2, 32), dtype=jnp.bfloat16)
    _check(q, kv, causal=False)

    # 2) Larger causal case: exercises multi-block tiling and the compacted
    #    scalar-prefetched block schedule.
    k1, k2, key = jax.random.split(key, 3)
    q = jax.random.normal(k1, (1, 1024, 2, 32), dtype=jnp.bfloat16)
    kv = jax.random.normal(k2, (1, 1024, 2, 2, 32), dtype=jnp.bfloat16)
    _check(q, kv, causal=True)

    # 3) Ragged non-causal case: exercises sequence padding + key-tail masking.
    k1, k2, key = jax.random.split(key, 3)
    q = jax.random.normal(k1, (2, 70, 2, 32), dtype=jnp.bfloat16)
    kv = jax.random.normal(k2, (2, 50, 2, 2, 32), dtype=jnp.bfloat16)
    _check(q, kv, causal=False)

    # 4) Ragged causal case: padded rows/columns + causal mask together.
    k1, k2, key = jax.random.split(key, 3)
    q = jax.random.normal(k1, (2, 70, 2, 32), dtype=jnp.bfloat16)
    kv = jax.random.normal(k2, (2, 70, 2, 2, 32), dtype=jnp.bfloat16)
    _check(q, kv, causal=True)

    print("KERNEL_OK")
</pallas_src>

<mosaic_0001>
module attributes {stable_mosaic.version = 11 : i64} {
  func.func @_dense_kernel(%arg0: i32, %arg1: i32, %arg2: i32, %arg3: memref<1x8x64xbf16, #tpu.memory_space<vmem>>, %arg4: memref<1x8x128xbf16, #tpu.memory_space<vmem>>, %arg5: memref<1x8x64xf32, #tpu.memory_space<vmem>>, %arg6: memref<2x8x32xbf16, #tpu.memory_space<vmem>>, %arg7: memref<2x8x1xf32, #tpu.memory_space<vmem>>, %arg8: memref<2x8x1xf32, #tpu.memory_space<vmem>>, %arg9: memref<2x8x32xf32, #tpu.memory_space<vmem>>) attributes {dimension_semantics = [#tpu.dimension_semantics<parallel>, #tpu.dimension_semantics<parallel>, #tpu.dimension_semantics<arbitrary>], iteration_bounds = array<i64: 2, 1, 1>, scalar_prefetch = 0 : i64, scratch_operands = 4 : i64, tpu.core_type = #tpu.core_type<tc>, window_params = [{transform_indices = @transform_0, window_bounds = array<i64: 1, 8, 64>}, {transform_indices = @transform_1, window_bounds = array<i64: 1, 8, 128>}, {transform_indices = @transform_2, window_bounds = array<i64: 1, 8, 64>}]} {
    %c0_i32 = arith.constant 0 : i32
    %0 = arith.cmpi eq, %arg2, %c0_i32 : i32
    %1 = arith.extui %0 : i1 to i32
    %c0_i32_0 = arith.constant 0 : i32
    %2 = arith.cmpi ne, %1, %c0_i32_0 : i32
    scf.if %2 {
      %cst_59 = arith.constant -1.000000e+30 : f32
      %84 = vector.broadcast %cst_59 : f32 to vector<2x8x1xf32>
      %c0_60 = arith.constant 0 : index
      %c0_61 = arith.constant 0 : index
      %c0_62 = arith.constant 0 : index
      %85 = vector.load %arg7[%c0_60, %c0_61, %c0_62] : memref<2x8x1xf32, #tpu.memory_space<vmem>>, vector<2x8x1xf32>
      tpu.vector_store %arg7[%c0_60, %c0_61, %c0_62], %84 {strides = array<i32>} : memref<2x8x1xf32, #tpu.memory_space<vmem>>, vector<2x8x1xf32>,
      %cst_63 = arith.constant 0.000000e+00 : f32
      %86 = vector.broadcast %cst_63 : f32 to vector<2x8x1xf32>
      %c0_64 = arith.constant 0 : index
      %c0_65 = arith.constant 0 : index
      %c0_66 = arith.constant 0 : index
      %87 = vector.load %arg8[%c0_64, %c0_65, %c0_66] : memref<2x8x1xf32, #tpu.memory_space<vmem>>, vector<2x8x1xf32>
      tpu.vector_store %arg8[%c0_64, %c0_65, %c0_66], %86 {strides = array<i32>} : memref<2x8x1xf32, #tpu.memory_space<vmem>>, vector<2x8x1xf32>,
      %cst_67 = arith.constant 0.000000e+00 : f32
      %88 = vector.broadcast %cst_67 : f32 to vector<2x8x32xf32>
      %c0_68 = arith.constant 0 : index
      %c0_69 = arith.constant 0 : index
      %c0_70 = arith.constant 0 : index
      %89 = vector.load %arg9[%c0_68, %c0_69, %c0_70] : memref<2x8x32xf32, #tpu.memory_space<vmem>>, vector<2x8x32xf32>
      tpu.vector_store %arg9[%c0_68, %c0_69, %c0_70], %88 {strides = array<i32>} : memref<2x8x32xf32, #tpu.memory_space<vmem>>, vector<2x8x32xf32>,
      %c0_71 = arith.constant 0 : index
      %c0_72 = arith.constant 0 : index
      %c0_73 = arith.constant 0 : index
      %90 = vector.load %arg3[%c0_71, %c0_72, %c0_73] : memref<1x8x64xbf16, #tpu.memory_space<vmem>>, vector<1x8x32xbf16>
      %91 = vector.shape_cast %90 : vector<1x8x32xbf16> to vector<8x32xbf16>
      %cst_74 = arith.constant 1.767580e-01 : bf16
      %92 = vector.broadcast %cst_74 : bf16 to vector<8x32xbf16>
      %93 = arith.mulf %91, %92 : vector<8x32xbf16>
      %c0_75 = arith.constant 0 : index
      %c0_76 = arith.constant 0 : index
      %c0_77 = arith.constant 0 : index
      %94 = vector.load %arg6[%c0_75, %c0_76, %c0_77] : memref<2x8x32xbf16, #tpu.memory_space<vmem>>, vector<1x8x32xbf16>
      %95 = vector.shape_cast %94 : vector<1x8x32xbf16> to vector<8x32xbf16>
      %96 = vector.shape_cast %93 : vector<8x32xbf16> to vector<1x8x32xbf16>
      tpu.vector_store %arg6[%c0_75, %c0_76, %c0_77], %96 {strides = array<i32>} : memref<2x8x32xbf16, #tpu.memory_space<vmem>>, vector<1x8x32xbf16>,
      %c0_78 = arith.constant 0 : index
      %c0_79 = arith.constant 0 : index
      %c32_80 = arith.constant 32 : index
      %97 = vector.load %arg3[%c0_78, %c0_79, %c32_80] : memref<1x8x64xbf16, #tpu.memory_space<vmem>>, vector<1x8x32xbf16>
      %98 = vector.shape_cast %97 : vector<1x8x32xbf16> to vector<8x32xbf16>
      %cst_81 = arith.constant 1.767580e-01 : bf16
      %99 = vector.broadcast %cst_81 : bf16 to vector<8x32xbf16>
      %100 = arith.mulf %98, %99 : vector<8x32xbf16>
      %c1_82 = arith.constant 1 : index
      %c0_83 = arith.constant 0 : index
      %c0_84 = arith.constant 0 : index
      %101 = vector.load %arg6[%c1_82, %c0_83, %c0_84] : memref<2x8x32xbf16, #tpu.memory_space<vmem>>, vector<1x8x32xbf16>
      %102 = vector.shape_cast %101 : vector<1x8x32xbf16> to vector<8x32xbf16>
      %103 = vector.shape_cast %100 : vector<8x32xbf16> to vector<1x8x32xbf16>
      tpu.vector_store %arg6[%c1_82, %c0_83, %c0_84], %103 {strides = array<i32>} : memref<2x8x32xbf16, #tpu.memory_space<vmem>>, vector<1x8x32xbf16>,
    } else {
    }
    %c0 = arith.constant 0 : index
    %c0_1 = arith.constant 0 : index
    %c0_2 = arith.constant 0 : index
    %3 = vector.load %arg6[%c0, %c0_1, %c0_2] : memref<2x8x32xbf16, #tpu.memory_space<vmem>>, vector<1x8x32xbf16>
    %4 = vector.shape_cast %3 : vector<1x8x32xbf16> to vector<8x32xbf16>
    %c0_3 = arith.constant 0 : index
    %c0_4 = arith.constant 0 : index
    %c0_5 = arith.constant 0 : index
    %5 = vector.load %arg4[%c0_3, %c0_4, %c0_5] : memref<1x8x128xbf16, #tpu.memory_space<vmem>>, vector<1x8x32xbf16>
    %6 = vector.shape_cast %5 : vector<1x8x32xbf16> to vector<8x32xbf16>
    %c0_6 = arith.constant 0 : index
    %c0_7 = arith.constant 0 : index
    %c64 = arith.constant 64 : index
    %7 = vector.load %arg4[%c0_6, %c0_7, %c64] : memref<1x8x128xbf16, #tpu.memory_space<vmem>>, vector<1x8x32xbf16>
    %8 = vector.shape_cast %7 : vector<1x8x32xbf16> to vector<8x32xbf16>
    %cst = arith.constant dense<0.000000e+00> : vector<8x8xf32>
    %9 = tpu.matmul %4, %6, %cst {dimension_numbers = #tpu.dot_dimension_numbers<[1], [1], [0], [0], [0, 0, 1, 0], [], []>} : vector<8x32xbf16>, vector<8x32xbf16>, vector<8x8xf32> -> vector<8x8xf32>
    %c0_8 = arith.constant 0 : index
    %c0_9 = arith.constant 0 : index
    %c0_10 = arith.constant 0 : index
    %10 = vector.load %arg7[%c0_8, %c0_9, %c0_10] : memref<2x8x1xf32, #tpu.memory_space<vmem>>, vector<1x8x1xf32>
    %11 = vector.shape_cast %10 : vector<1x8x1xf32> to vector<8x1xf32>
    %cst_11 = arith.constant dense<0xFF800000> : vector<8xf32>
    %12 = vector.multi_reduction <maximumf>, %9, %cst_11 [1] : vector<8x8xf32> to vector<8xf32>
    %13 = vector.shape_cast %12 : vector<8xf32> to vector<8x1xf32>
    %14 = arith.maximumf %11, %13 : vector<8x1xf32>
    %15 = arith.subf %11, %14 : vector<8x1xf32>
    %16 = math.exp %15 : vector<8x1xf32>
    %17 = vector.broadcast %14 : vector<8x1xf32> to vector<8x8xf32>
    %18 = arith.subf %9, %17 : vector<8x8xf32>
    %19 = math.exp %18 : vector<8x8xf32>
    %c0_12 = arith.constant 0 : index
    %c0_13 = arith.constant 0 : index
    %c0_14 = arith.constant 0 : index
    %20 = vector.load %arg8[%c0_12, %c0_13, %c0_14] : memref<2x8x1xf32, #tpu.memory_space<vmem>>, vector<1x8x1xf32>
    %21 = vector.shape_cast %20 : vector<1x8x1xf32> to vector<8x1xf32>
    %22 = arith.mulf %16, %21 : vector<8x1xf32>
    %cst_15 = arith.constant dense<0.000000e+00> : vector<8xf32>
    %23 = vector.multi_reduction <add>, %19, %cst_15 [1] : vector<8x8xf32> to vector<8xf32>
    %24 = vector.shape_cast %23 : vector<8xf32> to vector<8x1xf32>
    %25 = arith.addf %22, %24 : vector<8x1xf32>
    %c0_16 = arith.constant 0 : index
    %c0_17 = arith.constant 0 : index
    %c0_18 = arith.constant 0 : index
    %26 = vector.load %arg8[%c0_16, %c0_17, %c0_18] : memref<2x8x1xf32, #tpu.memory_space<vmem>>, vector<1x8x1xf32>
    %27 = vector.shape_cast %26 : vector<1x8x1xf32> to vector<8x1xf32>
    %28 = vector.shape_cast %25 : vector<8x1xf32> to vector<1x8x1xf32>
    tpu.vector_store %arg8[%c0_16, %c0_17, %c0_18], %28 {strides = array<i32>} : memref<2x8x1xf32, #tpu.memory_space<vmem>>, vector<1x8x1xf32>,
    %c0_19 = arith.constant 0 : index
    %c0_20 = arith.constant 0 : index
    %c0_21 = arith.constant 0 : index
    %29 = vector.load %arg9[%c0_19, %c0_20, %c0_21] : memref<2x8x32xf32, #tpu.memory_space<vmem>>, vector<1x8x32xf32>
    %30 = vector.shape_cast %29 : vector<1x8x32xf32> to vector<8x32xf32>
    %31 = vector.broadcast %16 : vector<8x1xf32> to vector<8x32xf32>
    %32 = arith.mulf %31, %30 : vector<8x32xf32>
    %33 = arith.truncf %19 : vector<8x8xf32> to vector<8x8xbf16>
    %cst_22 = arith.constant dense<0.000000e+00> : vector<8x32xf32>
    %34 = tpu.matmul %33, %8, %cst_22 {dimension_numbers = #tpu.dot_dimension_numbers<[1], [0], [0], [1], [0, 0, 1, 1], [], []>} : vector<8x8xbf16>, vector<8x32xbf16>, vector<8x32xf32> -> vector<8x32xf32>
    %35 = arith.addf %32, %34 : vector<8x32xf32>
    %c0_23 = arith.constant 0 : index
    %c0_24 = arith.constant 0 : index
    %c0_25 = arith.constant 0 : index
    %36 = vector.load %arg9[%c0_23, %c0_24, %c0_25] : memref<2x8x32xf32, #tpu.memory_space<vmem>>, vector<1x8x32xf32>
    %37 = vector.shape_cast %36 : vector<1x8x32xf32> to vector<8x32xf32>
    %38 = vector.shape_cast %35 : vector<8x32xf32> to vector<1x8x32xf32>
    tpu.vector_store %arg9[%c0_23, %c0_24, %c0_25], %38 {strides = array<i32>} : memref<2x8x32xf32, #tpu.memory_space<vmem>>, vector<1x8x32xf32>,
    %c0_26 = arith.constant 0 : index
    %c0_27 = arith.constant 0 : index
    %c0_28 = arith.constant 0 : index
    %39 = vector.load %arg7[%c0_26, %c0_27, %c0_28] : memref<2x8x1xf32, #tpu.memory_space<vmem>>, vector<1x8x1xf32>
    %40 = vector.shape_cast %39 : vector<1x8x1xf32> to vector<8x1xf32>
    %41 = vector.shape_cast %14 : vector<8x1xf32> to vector<1x8x1xf32>
    tpu.vector_store %arg7[%c0_26, %c0_27, %c0_28], %41 {strides = array<i32>} : memref<2x8x1xf32, #tpu.memory_space<vmem>>, vector<1x8x1xf32>,
    %c1 = arith.constant 1 : index
    %c0_29 = arith.constant 0 : index
    %c0_30 = arith.constant 0 : index
    %42 = vector.load %arg6[%c1, %c0_29, %c0_30] : memref<2x8x32xbf16, #tpu.memory_space<vmem>>, vector<1x8x32xbf16>
    %43 = vector.shape_cast %42 : vector<1x8x32xbf16> to vector<8x32xbf16>
    %c0_31 = arith.constant 0 : index
    %c0_32 = arith.constant 0 : index
    %c32 = arith.constant 32 : index
    %44 = vector.load %arg4[%c0_31, %c0_32, %c32] : memref<1x8x128xbf16, #tpu.memory_space<vmem>>, vector<1x8x32xbf16>
    %45 = vector.shape_cast %44 : vector<1x8x32xbf16> to vector<8x32xbf16>
    %c0_33 = arith.constant 0 : index
    %c0_34 = arith.constant 0 : index
    %c96 = arith.constant 96 : index
    %46 = vector.load %arg4[%c0_33, %c0_34, %c96] : memref<1x8x128xbf16, #tpu.memory_space<vmem>>, vector<1x8x32xbf16>
    %47 = vector.shape_cast %46 : vector<1x8x32xbf16> to vector<8x32xbf16>
    %cst_35 = arith.constant dense<0.000000e+00> : vector<8x8xf32>
    %48 = tpu.matmul %43, %45, %cst_35 {dimension_numbers = #tpu.dot_dimension_numbers<[1], [1], [0], [0], [0, 0, 1, 0], [], []>} : vector<8x32xbf16>, vector<8x32xbf16>, vector<8x8xf32> -> vector<8x8xf32>
    %c1_36 = arith.constant 1 : index
    %c0_37 = arith.constant 0 : index
    %c0_38 = arith.constant 0 : index
    %49 = vector.load %arg7[%c1_36, %c0_37, %c0_38] : memref<2x8x1xf32, #tpu.memory_space<vmem>>, vector<1x8x1xf32>
    %50 = vector.shape_cast %49 : vector<1x8x1xf32> to vector<8x1xf32>
    %cst_39 = arith.constant dense<0xFF800000> : vector<8xf32>
    %51 = vector.multi_reduction <maximumf>, %48, %cst_39 [1] : vector<8x8xf32> to vector<8xf32>
    %52 = vector.shape_cast %51 : vector<8xf32> to vector<8x1xf32>
    %53 = arith.maximumf %50, %52 : vector<8x1xf32>
    %54 = arith.subf %50, %53 : vector<8x1xf32>
    %55 = math.exp %54 : vector<8x1xf32>
    %56 = vector.broadcast %53 : vector<8x1xf32> to vector<8x8xf32>
    %57 = arith.subf %48, %56 : vector<8x8xf32>
    %58 = math.exp %57 : vector<8x8xf32>
    %c1_40 = arith.constant 1 : index
    %c0_41 = arith.constant 0 : index
    %c0_42 = arith.constant 0 : index
    %59 = vector.load %arg8[%c1_40, %c0_41, %c0_42] : memref<2x8x1xf32, #tpu.memory_space<vmem>>, vector<1x8x1xf32>
    %60 = vector.shape_cast %59 : vector<1x8x1xf32> to vector<8x1xf32>
    %61 = arith.mulf %55, %60 : vector<8x1xf32>
    %cst_43 = arith.constant dense<0.000000e+00> : vector<8xf32>
    %62 = vector.multi_reduction <add>, %58, %cst_43 [1] : vector<8x8xf32> to vector<8xf32>
    %63 = vector.shape_cast %62 : vector<8xf32> to vector<8x1xf32>
    %64 = arith.addf %61, %63 : vector<8x1xf32>
    %c1_44 = arith.constant 1 : index
    %c0_45 = arith.constant 0 : index
    %c0_46 = arith.constant 0 : index
    %65 = vector.load %arg8[%c1_44, %c0_45, %c0_46] : memref<2x8x1xf32, #tpu.memory_space<vmem>>, vector<1x8x1xf32>
    %66 = vector.shape_cast %65 : vector<1x8x1xf32> to vector<8x1xf32>
    %67 = vector.shape_cast %64 : vector<8x1xf32> to vector<1x8x1xf32>
    tpu.vector_store %arg8[%c1_44, %c0_45, %c0_46], %67 {strides = array<i32>} : memref<2x8x1xf32, #tpu.memory_space<vmem>>, vector<1x8x1xf32>,
    %c1_47 = arith.constant 1 : index
    %c0_48 = arith.constant 0 : index
    %c0_49 = arith.constant 0 : index
    %68 = vector.load %arg9[%c1_47, %c0_48, %c0_49] : memref<2x8x32xf32, #tpu.memory_space<vmem>>, vector<1x8x32xf32>
    %69 = vector.shape_cast %68 : vector<1x8x32xf32> to vector<8x32xf32>
    %70 = vector.broadcast %55 : vector<8x1xf32> to vector<8x32xf32>
    %71 = arith.mulf %70, %69 : vector<8x32xf32>
    %72 = arith.truncf %58 : vector<8x8xf32> to vector<8x8xbf16>
    %cst_50 = arith.constant dense<0.000000e+00> : vector<8x32xf32>
    %73 = tpu.matmul %72, %47, %cst_50 {dimension_numbers = #tpu.dot_dimension_numbers<[1], [0], [0], [1], [0, 0, 1, 1], [], []>} : vector<8x8xbf16>, vector<8x32xbf16>, vector<8x32xf32> -> vector<8x32xf32>
    %74 = arith.addf %71, %73 : vector<8x32xf32>
    %c1_51 = arith.constant 1 : index
    %c0_52 = arith.constant 0 : index
    %c0_53 = arith.constant 0 : index
    %75 = vector.load %arg9[%c1_51, %c0_52, %c0_53] : memref<2x8x32xf32, #tpu.memory_space<vmem>>, vector<1x8x32xf32>
    %76 = vector.shape_cast %75 : vector<1x8x32xf32> to vector<8x32xf32>
    %77 = vector.shape_cast %74 : vector<8x32xf32> to vector<1x8x32xf32>
    tpu.vector_store %arg9[%c1_51, %c0_52, %c0_53], %77 {strides = array<i32>} : memref<2x8x32xf32, #tpu.memory_space<vmem>>, vector<1x8x32xf32>,
    %c1_54 = arith.constant 1 : index
    %c0_55 = arith.constant 0 : index
    %c0_56 = arith.constant 0 : index
    %78 = vector.load %arg7[%c1_54, %c0_55, %c0_56] : memref<2x8x1xf32, #tpu.memory_space<vmem>>, vector<1x8x1xf32>
    %79 = vector.shape_cast %78 : vector<1x8x1xf32> to vector<8x1xf32>
    %80 = vector.shape_cast %53 : vector<8x1xf32> to vector<1x8x1xf32>
    tpu.vector_store %arg7[%c1_54, %c0_55, %c0_56], %80 {strides = array<i32>} : memref<2x8x1xf32, #tpu.memory_space<vmem>>, vector<1x8x1xf32>,
    %c0_i32_57 = arith.constant 0 : i32
    %81 = arith.cmpi eq, %arg2, %c0_i32_57 : i32
    %82 = arith.extui %81 : i1 to i32
    %c0_i32_58 = arith.constant 0 : i32
    %83 = arith.cmpi ne, %82, %c0_i32_58 : i32
    scf.if %83 {
      %c0_59 = arith.constant 0 : index
      %c0_60 = arith.constant 0 : index
      %c0_61 = arith.constant 0 : index
      %84 = vector.load %arg8[%c0_59, %c0_60, %c0_61] : memref<2x8x1xf32, #tpu.memory_space<vmem>>, vector<1x8x1xf32>
      %85 = vector.shape_cast %84 : vector<1x8x1xf32> to vector<8x1xf32>
      %86 = tpu.reciprocal %85 {approx = true} : vector<8x1xf32> -> vector<8x1xf32>
      %c0_62 = arith.constant 0 : index
      %c0_63 = arith.constant 0 : index
      %c0_64 = arith.constant 0 : index
      %87 = vector.load %arg9[%c0_62, %c0_63, %c0_64] : memref<2x8x32xf32, #tpu.memory_space<vmem>>, vector<1x8x32xf32>
      %88 = vector.shape_cast %87 : vector<1x8x32xf32> to vector<8x32xf32>
      %89 = vector.broadcast %86 : vector<8x1xf32> to vector<8x32xf32>
      %90 = arith.mulf %88, %89 : vector<8x32xf32>
      %c0_65 = arith.constant 0 : index
      %c0_66 = arith.constant 0 : index
      %c0_67 = arith.constant 0 : index
      %91 = vector.load %arg5[%c0_65, %c0_66, %c0_67] : memref<1x8x64xf32, #tpu.memory_space<vmem>>, vector<1x8x32xf32>
      %92 = vector.shape_cast %91 : vector<1x8x32xf32> to vector<8x32xf32>
      %93 = vector.shape_cast %90 : vector<8x32xf32> to vector<1x8x32xf32>
      tpu.vector_store %arg5[%c0_65, %c0_66, %c0_67], %93 {strides = array<i32>} : memref<1x8x64xf32, #tpu.memory_space<vmem>>, vector<1x8x32xf32>,
      %c1_68 = arith.constant 1 : index
      %c0_69 = arith.constant 0 : index
      %c0_70 = arith.constant 0 : index
      %94 = vector.load %arg8[%c1_68, %c0_69, %c0_70] : memref<2x8x1xf32, #tpu.memory_space<vmem>>, vector<1x8x1xf32>
      %95 = vector.shape_cast %94 : vector<1x8x1xf32> to vector<8x1xf32>
      %96 = tpu.reciprocal %95 {approx = true} : vector<8x1xf32> -> vector<8x1xf32>
      %c1_71 = arith.constant 1 : index
      %c0_72 = arith.constant 0 : index
      %c0_73 = arith.constant 0 : index
      %97 = vector.load %arg9[%c1_71, %c0_72, %c0_73] : memref<2x8x32xf32, #tpu.memory_space<vmem>>, vector<1x8x32xf32>
      %98 = vector.shape_cast %97 : vector<1x8x32xf32> to vector<8x32xf32>
      %99 = vector.broadcast %96 : vector<8x1xf32> to vector<8x32xf32>
      %100 = arith.mulf %98, %99 : vector<8x32xf32>
      %c0_74 = arith.constant 0 : index
      %c0_75 = arith.constant 0 : index
      %c32_76 = arith.constant 32 : index
      %101 = vector.load %arg5[%c0_74, %c0_75, %c32_76] : memref<1x8x64xf32, #tpu.memory_space<vmem>>, vector<1x8x32xf32>
      %102 = vector.shape_cast %101 : vector<1x8x32xf32> to vector<8x32xf32>
      %103 = vector.shape_cast %100 : vector<8x32xf32> to vector<1x8x32xf32>
      tpu.vector_store %arg5[%c0_74, %c0_75, %c32_76], %103 {strides = array<i32>} : memref<1x8x64xf32, #tpu.memory_space<vmem>>, vector<1x8x32xf32>,
    } else {
    }
    return
  }
  func.func @transform_0(%arg0: i32, %arg1: i32, %arg2: i32) -> (i32, i32, i32) {
    %c0_i32 = arith.constant 0 : i32
    %c0_i32_0 = arith.constant 0 : i32
    return %arg0, %arg1, %c0_i32 : i32, i32, i32
  }
  func.func @transform_1(%arg0: i32, %arg1: i32, %arg2: i32) -> (i32, i32, i32) {
    %c0_i32 = arith.constant 0 : i32
    %c0_i32_0 = arith.constant 0 : i32
    return %arg0, %arg2, %c0_i32 : i32, i32, i32
  }
  func.func @transform_2(%arg0: i32, %arg1: i32, %arg2: i32) -> (i32, i32, i32) {
    %c0_i32 = arith.constant 0 : i32
    %c0_i32_0 = arith.constant 0 : i32
    return %arg0, %arg1, %c0_i32 : i32, i32, i32
  }
}

</mosaic_0001>

<llo_original>
// kernel: tpu_custom_call.1
$region0: #{tpu_custom_call.1}
  #allocation0 [shape = 'u32[]', space=smem, size = 0x4, offset = 0x4, fixed_abs, tag = 'smem constant byte address 0x4 - core index']
  #allocation1 [shape = 'u32[144,128]{1,0:T(1,128)}', space=vmem, size = 0x12000, scoped, tag = 'internal scratch']
  #allocation2 [shape = 'bf16[2,8,32]{2,1,0:T(8,128)(2,1)}', space=vmem, size = 0x1000, scoped, tag = 'scratch operand']
  #allocation3 [shape = 'f32[2,8,1]{2,1,0:T(8,128)}', space=vmem, size = 0x2000, scoped, tag = 'scratch operand']
  #allocation4 [shape = 'f32[2,8,1]{2,1,0:T(8,128)}', space=vmem, size = 0x2000, scoped, tag = 'scratch operand']
  #allocation5 [shape = 'f32[2,8,32]{2,1,0:T(8,128)}', space=vmem, size = 0x2000, scoped, tag = 'scratch operand']
  %s0 = inlined_call_operand.hbm [shape: bf16[2,8,64], index: 0, kind: input, shape index: {}]
  %s1 = inlined_call_operand.hbm [shape: bf16[2,8,128], index: 1, kind: input, shape index: {}]
  %s2 = inlined_call_operand.hbm [shape: f32[2,8,64], index: 2, kind: output, shape index: {}]
  %s3 = sld [smem:[#allocation0]]
  $region57: #{tpu_custom_call.1} parent=0
    _
  %s5 = ssub.s32 1, %s3
  %s6 = scalar_select 0, %s5, %s3
  $region1: #{tpu_custom_call.1} parent=0
    #allocation6 [shape = 'u8[4096]{0}', space=vmem, size = 0x1000, scoped, tag = 'input window, operand 0']
    #allocation7 [shape = 's32[2]{0}', space=sflag, size = 0x8, scoped, tag = 'scoped memory for tpu_custom_call.1']
    #allocation8 [shape = 's32[2]{0}', space=sflag, size = 0x8, scoped, tag = 'scoped memory for tpu_custom_call.1']
    #allocation9 [shape = 'u8[4096]{0}', space=vmem, size = 0x1000, scoped, tag = 'input window, operand 1']
    #allocation10 [shape = 's32[2]{0}', space=sflag, size = 0x8, scoped, tag = 'scoped memory for tpu_custom_call.1']
    #allocation11 [shape = 'u8[8192]{0}', space=vmem, size = 0x2000, scoped, tag = 'output window, operand 0']
    %7 = vsyncpa [#allocation7], 0
    %s8 = scalar_lea.sflag [#allocation7], 1
    %9 = vsyncpa %s8, 0
    %10 = vsyncpa [#allocation10], 0
    %s11 = scalar_lea.sflag [#allocation10], 1
    %12 = vsyncpa %s11, 0
    %13 = vsyncpa [#allocation8], 0
    %s14 = scalar_lea.sflag [#allocation8], 1
    %15 = vsyncpa %s14, 0
    loop: start=0, step=1, limit=4
    $region2: #{tpu_custom_call.1} parent=1 // loop_pre_header
      _
    $region3: #{tpu_custom_call.1} parent=1 // loop_header
      %s17 = sphi 0, %s21
      %p18 = scmp.ge.s32.totalorder %s17, 4
      %s24 = sphi 0, %s43
      %s25 = sphi 0, %s39
      %s26 = sphi 0, %s35
      %s27 = sphi 0, %s24
      %s28 = sphi 0, %s25
      %s29 = sphi 0, %s26
      %s30 = sphi 0, %s27
      %s31 = sphi 0, %s28
      %s32 = sphi 0, %s29
      %s48 = sphi 0, %s50
      %s51 = sphi 0, %s48
      %s52 = sphi 0, %s51
      %s68 = sphi 0, %s52
      %s76 = sphi 0, %s78
      %s79 = sphi 0, %s76
      %s80 = sphi 0, %s79
      %s96 = sphi 0, %s80
      %s104 = sphi 0, %s106
      %s107 = sphi 0, %s104
      %s108 = sphi 0, %s107
      %s124 = sphi 0, %s108
    $region4: #{tpu_custom_call.1} parent=1 // loop_header_branch
      %20 = sbr.rel (%p18) target = $region8
    $region5: #{tpu_custom_call.1} parent=1 // loop_body
      %s22 = ssub.s32 %s17, 1
      %s23 = ssub.s32 %s17, 2
      %s33 = sadd.s32 1, %s26
      %p34 = scmp.ge.s32.totalorder %s33, 1
      %s35 = scalar_select %p34, 0, %s33
      %s36 = sadd.s32 1, %s25
      %s37 = scalar_select %p34, %s36, %s25
      %p38 = scmp.ge.s32.totalorder %s37, 1
      %s39 = scalar_select %p38, 0, %s37
      %s40 = sadd.s32 1, %s24
      %s41 = scalar_select %p38, %s40, %s24
      %p42 = scmp.ge.s32.totalorder %s41, 2
      %s43 = scalar_select %p42, 0, %s41
      %s44 = ssub.s32 %s24, %s43
      %s45 = ssub.s32 %s25, %s39
      %s46 = sor.u32 %s44, %s45
      %p47 = scmp.eq.s32.totalorder %s46, 0
      %s49 = sadd.s32 %s48, 1
      %s50 = scalar_select %p47, %s48, %s49
      %p53 = pneg %p47
      %p54 = scmp.eq.s32.totalorder %s17, 1
      %p55 = por %p53, %p54
      %p56 = scmp.ne.s32.totalorder %s48, %s51
      %p57 = scmp.eq.s32.totalorder %s17, 0
      %p58 = por %p56, %p57
      %p59 = scmp.ne.s32.totalorder %s48, %s51
      %p60 = scmp.eq.s32.totalorder %s22, 1
      %p61 = por %p59, %p60
      %p62 = scmp.ne.s32.totalorder %s51, %s52
      %p63 = scmp.eq.s32.totalorder %s22, 0
      %p64 = por %p62, %p63
      %p65 = scmp.ne.s32.totalorder %s51, %s52
      %p66 = scmp.eq.s32.totalorder %s23, 1
      %p67 = por %p65, %p66
      %p69 = scmp.ne.s32.totalorder %s52, %s68
      %p70 = scmp.eq.s32.totalorder %s23, 0
      %p71 = por %p69, %p70
      %s72 = ssub.s32 %s24, %s43
      %s73 = ssub.s32 %s26, %s35
      %s74 = sor.u32 %s72, %s73
      %p75 = scmp.eq.s32.totalorder %s74, 0
      %s77 = sadd.s32 %s76, 1
      %s78 = scalar_select %p75, %s76, %s77
      %p81 = pneg %p75
      %p82 = scmp.eq.s32.totalorder %s17, 1
      %p83 = por %p81, %p82
      %p84 = scmp.ne.s32.totalorder %s76, %s79
      %p85 = scmp.eq.s32.totalorder %s17, 0
      %p86 = por %p84, %p85
      %p87 = scmp.ne.s32.totalorder %s76, %s79
      %p88 = scmp.eq.s32.totalorder %s22, 1
      %p89 = por %p87, %p88
      %p90 = scmp.ne.s32.totalorder %s79, %s80
      %p91 = scmp.eq.s32.totalorder %s22, 0
      %p92 = por %p90, %p91
      %p93 = scmp.ne.s32.totalorder %s79, %s80
      %p94 = scmp.eq.s32.totalorder %s23, 1
      %p95 = por %p93, %p94
      %p97 = scmp.ne.s32.totalorder %s80, %s96
      %p98 = scmp.eq.s32.totalorder %s23, 0
      %p99 = por %p97, %p98
      %s100 = ssub.s32 %s24, %s43
      %s101 = ssub.s32 %s25, %s39
      %s102 = sor.u32 %s100, %s101
      %p103 = scmp.eq.s32.totalorder %s102, 0
      %s105 = sadd.s32 %s104, 1
      %s106 = scalar_select %p103, %s104, %s105
      %p109 = pneg %p103
      %p110 = scmp.eq.s32.totalorder %s17, 1
      %p111 = por %p109, %p110
      %p112 = scmp.ne.s32.totalorder %s104, %s107
      %p113 = scmp.eq.s32.totalorder %s17, 0
      %p114 = por %p112, %p113
      %p115 = scmp.ne.s32.totalorder %s104, %s107
      %p116 = scmp.eq.s32.totalorder %s22, 1
      %p117 = por %p115, %p116
      %p118 = scmp.ne.s32.totalorder %s107, %s108
      %p119 = scmp.eq.s32.totalorder %s22, 0
      %p120 = por %p118, %p119
      %p121 = scmp.ne.s32.totalorder %s107, %s108
      %p122 = scmp.eq.s32.totalorder %s23, 1
      %p123 = por %p121, %p122
      %p125 = scmp.ne.s32.totalorder %s108, %s124
      %p126 = scmp.eq.s32.totalorder %s23, 0
      %p127 = por %p125, %p126
      %p128 = scmp.le.s32.totalorder 1, %s17
      %p129 = scmp.lt.s32.totalorder %s17, 3
      %p130 = pnand %p128, %p129
      %p131 = pneg %p130
      // Predicated region
      $region9: #{tpu_custom_call.1} parent=5 // pred_check
        _
      $region10: #{tpu_custom_call.1} parent=5 // pred_check_branch
        %133 = sbr.rel (%p130) target = $region12
      $region11: #{tpu_custom_call.1} parent=5 // pred_region
        %s134 = ssub.s32 %s17, 1
      $region12: #{tpu_custom_call.1} parent=5 // pred_fallthru
        _
      %p135 = scmp.lt.s32.totalorder %s17, 2
      // Predicated region
      $region13: #{tpu_custom_call.1} parent=5 // pred_check
        %p136 = pneg %p135
      $region14: #{tpu_custom_call.1} parent=5 // pred_check_branch
        %138 = sbr.rel (%p136) target = $region16
      $region15: #{tpu_custom_call.1} parent=5 // pred_region
        // Predicated region
        $region17: #{tpu_custom_call.1} parent=15 // pred_check
          %p139 = pneg %p58
        $region18: #{tpu_custom_call.1} parent=15 // pred_check_branch
          %141 = sbr.rel (%p139) target = $region20
        $region19: #{tpu_custom_call.1} parent=15 // pred_region
          %s142 = sand.u32 %s48, 1
          %s143 = scalar_lea.sflag [#allocation7], %s142
          %s144 = sand.u32 %s48, 1
          %s145 = smul.addr %s144, 4
          %s146 = scalar_lea.vmem [#allocation6], %s145
          %s148 = ssub.s32 64, 64
          %149 = vsyncadd %s143, %s148
          %s150 = sadd.s32 %s25, %s24
          %s151 = smul.addr %s150, 64
          %s152 = scalar_lea.hbm %s0, %s151
          %s154 = sshll.u32 %s146, 4
          %s155 = int_to_ptr.vmem [resolvable:$true] %s154
          %157 = dma.hbm_to_vmem [thread:$0]  %s152, 64, %s155, %s143
        $region20: #{tpu_custom_call.1} parent=15 // pred_fallthru
          _
        // Predicated region
        $region21: #{tpu_custom_call.1} parent=15 // pred_check
          %p158 = pneg %p86
        $region22: #{tpu_custom_call.1} parent=15 // pred_check_branch
          %160 = sbr.rel (%p158) target = $region24
        $region23: #{tpu_custom_call.1} parent=15 // pred_region
          %s161 = sand.u32 %s76, 1
          %s162 = scalar_lea.sflag [#allocation10], %s161
          %s163 = sand.u32 %s76, 1
          %s164 = smul.addr %s163, 4
          %s165 = scalar_lea.vmem [#allocation9], %s164
          %s167 = ssub.s32 64, 64
          %168 = vsyncadd %s162, %s167
          %s169 = sadd.s32 %s26, %s24
          %s170 = smul.addr %s169, 64
          %s171 = scalar_lea.hbm %s1, %s170
          %s173 = sshll.u32 %s165, 4
          %s174 = int_to_ptr.vmem [resolvable:$true] %s173
          %176 = dma.hbm_to_vmem [thread:$0]  %s171, 64, %s174, %s162
        $region24: #{tpu_custom_call.1} parent=15 // pred_fallthru
          _
      $region16: #{tpu_custom_call.1} parent=5 // pred_fallthru
        _
      %p177 = scmp.le.s32.totalorder 1, %s17
      %p178 = scmp.lt.s32.totalorder %s17, 3
      %p179 = pnand %p177, %p178
      %p180 = pneg %p179
      // Predicated region
      $region25: #{tpu_custom_call.1} parent=5 // pred_check
        _
      $region26: #{tpu_custom_call.1} parent=5 // pred_check_branch
        %182 = sbr.rel (%p179) target = $region28
      $region27: #{tpu_custom_call.1} parent=5 // pred_region
        %s183 = ssub.s32 %s17, 1
        %s184 = sand.u32 %s51, 1
        %s185 = scalar_lea.sflag [#allocation7], %s184
        %s186 = sand.u32 %s51, 1
        %s187 = smul.addr %s186, 4
        %s188 = scalar_lea.vmem [#allocation6], %s187
        // Predicated region
        $region29: #{tpu_custom_call.1} parent=27 // pred_check
          %p189 = pneg %p64
        $region30: #{tpu_custom_call.1} parent=27 // pred_check_branch
          %191 = sbr.rel (%p189) target = $region32
        $region31: #{tpu_custom_call.1} parent=27 // pred_region
          %192 = dma.done %s185, 64
        $region32: #{tpu_custom_call.1} parent=27 // pred_fallthru
          _
        %s193 = sand.u32 %s79, 1
        %s194 = scalar_lea.sflag [#allocation10], %s193
        %s195 = sand.u32 %s79, 1
        %s196 = smul.addr %s195, 4
        %s197 = scalar_lea.vmem [#allocation9], %s196
        // Predicated region
        $region33: #{tpu_custom_call.1} parent=27 // pred_check
          %p198 = pneg %p92
        $region34: #{tpu_custom_call.1} parent=27 // pred_check_branch
          %200 = sbr.rel (%p198) target = $region36
        $region35: #{tpu_custom_call.1} parent=27 // pred_region
          %201 = dma.done %s194, 64
        $region36: #{tpu_custom_call.1} parent=27 // pred_fallthru
          _
        %s202 = sand.u32 %s51, 1
        %s203 = scalar_lea.sflag [#allocation7], %s202
        %s204 = sand.u32 %s51, 1
        %s205 = smul.addr %s204, 4
        %s206 = scalar_lea.vmem [#allocation6], %s205
        %p207 = pneg %p64
        %p208 = pneg %p61
        %s209 = sand.u32 %s79, 1
        %s210 = scalar_lea.sflag [#allocation10], %s209
        %s211 = sand.u32 %s79, 1
        %s212 = smul.addr %s211, 4
        %s213 = scalar_lea.vmem [#allocation9], %s212
        %p214 = pneg %p92
        %p215 = pneg %p89
        %p216 = pneg %p120
        %p217 = pneg %p117
        %s218 = sand.u32 %s107, 1
        %s219 = scalar_lea.sflag [#allocation8], %s218
        %s220 = sand.u32 %s107, 1
        %s221 = smul.addr %s220, 8
        %s222 = scalar_lea.vmem [#allocation11], %s221
        %p225 = scmp.eq.s32.totalorder %s29, 0
        // Predicated region
        $region37: #{tpu_custom_call.1} parent=27 // pred_check
          %p226 = pneg %p225
        $region38: #{tpu_custom_call.1} parent=27 // pred_check_branch
          %228 = sbr.rel (%p226) target = $region40
        $region39: #{tpu_custom_call.1} parent=27 // pred_region
          %vm229 = vcmask 7168
          %230 = vst.msk [vmem:[#allocation3] sm:$0xff] %vm229, -1e+30
          %231 = vst.msk [vmem:[#allocation3 + $0x8] sm:$0xff] %vm229, -1e+30
          %232 = vst.msk [vmem:[#allocation4] sm:$0xff] %vm229, 0.0
          %233 = vst.msk [vmem:[#allocation4 + $0x8] sm:$0xff] %vm229, 0.0
          %vm234 = vcmask 261120
          %235 = vst.msk [vmem:[#allocation5] sm:$0xff] %vm234, 0.0
          %236 = vst.msk [vmem:[#allocation5 + $0x8] sm:$0xff] %vm234, 0.0
          %v237 = vld [vmem:[%s188] sm:$0xf]
          %v238 = vmul.bf16 %v237, 1043676725
          %vm239 = vcmask 257024
          %240 = vst.msk [vmem:[#allocation2] sm:$0xf] %vm239, %v238
          %v241 = vld [vmem:[%s188] sm:$0xf]
          %v242 = vmul.bf16 %v241, 1043676725
          %244 = vrot.lane.b32.xlu0 %v242, 96
          %v245 = vpop.permute.xlu0 %244
          %s247 = scalar_lea.vmem [#allocation2], 4
          %248 = vst.msk [vmem:[%s247] sm:$0xf] %vm239, %v245
        $region40: #{tpu_custom_call.1} parent=27 // pred_fallthru
          _
        %v249 = vld [vmem:[#allocation2] sm:$0xf]
        %v250 = vld [vmem:[%s197] sm:$0xf]
        %vm251 = vcmask 261120
        %v253 = vsel %vm251, %v249, 0
        %v256 = vsel %vm251, %v250, 0
        %258 = vmatprep.subr.bf16.mxu0 0
        %259 = vmatpush1.bf16.xpose.msra.mxu0 0
        %260 = vmatprep.subr.bf16.mxu0 0
        %261 = vmatpush1.bf16.xpose.msra.mxu0 0
        %262 = vmatprep.subr.bf16.mxu0 0
        %263 = vmatpush1.bf16.xpose.msra.mxu0 0
        %264 = vmatprep.subr.bf16.mxu0 0
        %265 = vmatpush1.bf16.xpose.msra.mxu0 0
        %266 = vmatprep.subr.bf16.mxu0 0
        %267 = vmatpush1.bf16.xpose.msra.mxu0 0
        %268 = vmatprep.subr.bf16.mxu0 0
        %269 = vmatpush1.bf16.xpose.msra.mxu0 0
        %270 = vmatprep.subr.bf16.mxu0 0
        %271 = vmatpush1.bf16.xpose.msra.mxu0 0
        %272 = vmatprep.subr.bf16.mxu0 0
        %273 = vmatpush1.bf16.xpose.msra.mxu0 %v256
        %274 = vmatprep.subr.bf16.mxu0 0
        %275 = vmatpush2.bf16.xpose.msra.mxu0 0
        %276 = vmatprep.subr.bf16.mxu0 0
        %277 = vmatpush2.bf16.xpose.msra.mxu0 0
        %278 = vmatprep.subr.bf16.mxu0 0
        %279 = vmatpush2.bf16.xpose.msra.mxu0 0
        %280 = vmatprep.subr.bf16.mxu0 0
        %281 = vmatpush2.bf16.xpose.msra.mxu0 0
        %282 = vmatprep.subr.bf16.mxu0 0
        %283 = vmatpush2.bf16.xpose.msra.mxu0 0
        %284 = vmatprep.subr.bf16.mxu0 0
        %285 = vmatpush2.bf16.xpose.msra.mxu0 0
        %286 = vmatprep.subr.bf16.mxu0 0
        %287 = vmatpush2.bf16.xpose.msra.mxu0 0
        %288 = vmatprep.subr.bf16.mxu0 0
        %289 = vmatpush2.bf16.xpose.msra.mxu0 0
        %290 = vmatprep.mubr.bf16.mxu0 0
        %291 = vmatmul.mubr.bf16.gmra.mxu0 %v253
        %v292 = vpop.f32.mrf.mxu0
        %v293 = vadd.f32 0.0, %v292
        %v294 = vpop.f32.mrf.mxu0
        %v295 = vpop.f32.mrf.mxu0
        %v296 = vpop.f32.mrf.mxu0
        %297 = vdwg.mxu0
        %v298 = vld [vmem:[#allocation3] sm:$0xff]
        %vm299 = vcmask 64512
        %v300 = vsel %vm299, %v293, -inf
        %301 = vmax.xlane.f32.xlu0 %v300
        %v302 = vpop.xlane.xlu0 %301
        %v303 = vmax.f32 %v298, %v302
        %v304 = vsub.f32 %v298, %v303
        %v305 = vmul.f32 %v304, 1.442695
        %v306 = vpow.pop %v305
        %308 = vset.pattern.permute.xlu0 0
        %309 = vperm.xlu0 %308, %v303
        %v310 = vpop.permute.xlu0 %309
        %v312 = vsub.f32 %v293, %v310
        %v313 = vmul.f32 %v312, 1.442695
        %v314 = vpow.pop %v313
        %v315 = vld [vmem:[#allocation4] sm:$0xff]
        %v316 = vmul.f32 %v306, %v315
        %v317 = vsel %vm299, %v314, 0.0
        %318 = vadd.xlane.f32.xlu0 %v317
        %v319 = vpop.xlane.xlu0 %318
        %v320 = vadd.f32 %v316, %v319
        %vm321 = vcmask 7168
        %322 = vst.msk [vmem:[#allocation4] sm:$0xff] %vm321, %v320
        %v323 = vld [vmem:[#allocation5] sm:$0xff]
        %325 = vset.pattern.permute.xlu0 0
        %326 = vperm.xlu0 %325, %v306
        %v327 = vpop.permute.xlu0 %326
        %v329 = vmul.f32 %v327, %v323
        %v330 = vpack.c.bf16 %v314, %v314
        %v332 = vunpack.c.l.b16 %v250
        %v333 = vpack.c.b16 %v332, %v332
        %334 = vrot.lane.b32.xlu0 %v333, 64
        %v335 = vpop.permute.xlu0 %334
        %v337 = vsel %vm299, %v330, 0
        %vm339 = vcmask 1043456
        %v341 = vsel %vm339, %v335, 0
        %343 = vmatprep.subr.bf16.mxu0 0
        %344 = vmatpush1.bf16.msra.mxu0 0
        %345 = vmatprep.subr.bf16.mxu0 0
        %346 = vmatpush1.bf16.msra.mxu0 0
        %347 = vmatprep.subr.bf16.mxu0 0
        %348 = vmatpush1.bf16.msra.mxu0 0
        %349 = vmatprep.subr.bf16.mxu0 0
        %350 = vmatpush1.bf16.msra.mxu0 0
        %351 = vmatprep.subr.bf16.mxu0 0
        %352 = vmatpush1.bf16.msra.mxu0 0
        %353 = vmatprep.subr.bf16.mxu0 0
        %354 = vmatpush1.bf16.msra.mxu0 0
        %355 = vmatprep.subr.bf16.mxu0 0
        %356 = vmatpush1.bf16.msra.mxu0 0
        %357 = vmatprep.subr.bf16.mxu0 0
        %358 = vmatpush1.bf16.msra.mxu0 %v341
        %359 = vmatprep.subr.bf16.mxu0 0
        %360 = vmatpush2.bf16.msra.mxu0 0
        %361 = vmatprep.subr.bf16.mxu0 0
        %362 = vmatpush2.bf16.msra.mxu0 0
        %363 = vmatprep.subr.bf16.mxu0 0
        %364 = vmatpush2.bf16.msra.mxu0 0
        %365 = vmatprep.subr.bf16.mxu0 0
        %366 = vmatpush2.bf16.msra.mxu0 0
        %367 = vmatprep.subr.bf16.mxu0 0
        %368 = vmatpush2.bf16.msra.mxu0 0
        %369 = vmatprep.subr.bf16.mxu0 0
        %370 = vmatpush2.bf16.msra.mxu0 0
        %371 = vmatprep.subr.bf16.mxu0 0
        %372 = vmatpush2.bf16.msra.mxu0 0
        %373 = vmatprep.subr.bf16.mxu0 0
        %374 = vmatpush2.bf16.msra.mxu0 0
        %375 = vmatprep.mubr.bf16.mxu0 0
        %376 = vmatmul.mubr.bf16.gmra.mxu0 %v337
        %v377 = vpop.f32.mrf.mxu0
        %v378 = vadd.f32 0.0, %v377
        %v379 = vpop.f32.mrf.mxu0
        %v380 = vpop.f32.mrf.mxu0
        %v381 = vpop.f32.mrf.mxu0
        %382 = vdwg.mxu0
        %v383 = vadd.f32 %v329, %v378
        %384 = vst.msk [vmem:[#allocation5] sm:$0xff] %vm251, %v383
        %385 = vst.msk [vmem:[#allocation3] sm:$0xff] %vm321, %v303
        %s386 = scalar_lea.vmem [#allocation2], 4
        %v387 = vld [vmem:[%s386] sm:$0xf]
        %v388 = vld [vmem:[%s197] sm:$0xf]
        %v390 = vunpack.c.l.b16 %v388
        %v391 = vpack.c.b16 %v390, %v390
        %392 = vrot.lane.b32.xlu0 %v391, 96
        %v393 = vpop.permute.xlu0 %392
        %v395 = vsel %vm251, %v387, 0
        %v398 = vsel %vm251, %v393, 0
        %400 = vmatprep.subr.bf16.mxu0 0
        %401 = vmatpush1.bf16.xpose.msra.mxu0 0
        %402 = vmatprep.subr.bf16.mxu0 0
        %403 = vmatpush1.bf16.xpose.msra.mxu0 0
        %404 = vmatprep.subr.bf16.mxu0 0
        %405 = vmatpush1.bf16.xpose.msra.mxu0 0
        %406 = vmatprep.subr.bf16.mxu0 0
        %407 = vmatpush1.bf16.xpose.msra.mxu0 0
        %408 = vmatprep.subr.bf16.mxu0 0
        %409 = vmatpush1.bf16.xpose.msra.mxu0 0
        %410 = vmatprep.subr.bf16.mxu0 0
        %411 = vmatpush1.bf16.xpose.msra.mxu0 0
        %412 = vmatprep.subr.bf16.mxu0 0
        %413 = vmatpush1.bf16.xpose.msra.mxu0 0
        %414 = vmatprep.subr.bf16.mxu0 0
        %415 = vmatpush1.bf16.xpose.msra.mxu0 %v398
        %416 = vmatprep.subr.bf16.mxu0 0
        %417 = vmatpush2.bf16.xpose.msra.mxu0 0
        %418 = vmatprep.subr.bf16.mxu0 0
        %419 = vmatpush2.bf16.xpose.msra.mxu0 0
        %420 = vmatprep.subr.bf16.mxu0 0
        %421 = vmatpush2.bf16.xpose.msra.mxu0 0
        %422 = vmatprep.subr.bf16.mxu0 0
        %423 = vmatpush2.bf16.xpose.msra.mxu0 0
        %424 = vmatprep.subr.bf16.mxu0 0
        %425 = vmatpush2.bf16.xpose.msra.mxu0 0
        %426 = vmatprep.subr.bf16.mxu0 0
        %427 = vmatpush2.bf16.xpose.msra.mxu0 0
        %428 = vmatprep.subr.bf16.mxu0 0
        %429 = vmatpush2.bf16.xpose.msra.mxu0 0
        %430 = vmatprep.subr.bf16.mxu0 0
        %431 = vmatpush2.bf16.xpose.msra.mxu0 0
        %432 = vmatprep.mubr.bf16.mxu0 0
        %433 = vmatmul.mubr.bf16.gmra.mxu0 %v395
        %v434 = vpop.f32.mrf.mxu0
        %v435 = vadd.f32 0.0, %v434
        %v436 = vpop.f32.mrf.mxu0
        %v437 = vpop.f32.mrf.mxu0
        %v438 = vpop.f32.mrf.mxu0
        %439 = vdwg.mxu0
        %s440 = scalar_lea.vmem [#allocation3], 8
        %v441 = vld [vmem:[%s440] sm:$0xff]
        %v442 = vsel %vm299, %v435, -inf
        %443 = vmax.xlane.f32.xlu0 %v442
        %v444 = vpop.xlane.xlu0 %443
        %v445 = vmax.f32 %v441, %v444
        %v446 = vsub.f32 %v441, %v445
        %v447 = vmul.f32 %v446, 1.442695
        %v448 = vpow.pop %v447
        %450 = vset.pattern.permute.xlu0 0
        %451 = vperm.xlu0 %450, %v445
        %v452 = vpop.permute.xlu0 %451
        %v454 = vsub.f32 %v435, %v452
        %v455 = vmul.f32 %v454, 1.442695
        %v456 = vpow.pop %v455
        %s457 = scalar_lea.vmem [#allocation4], 8
        %v458 = vld [vmem:[%s457] sm:$0xff]
        %v459 = vmul.f32 %v448, %v458
        %v460 = vsel %vm299, %v456, 0.0
        %461 = vadd.xlane.f32.xlu0 %v460
        %v462 = vpop.xlane.xlu0 %461
        %v463 = vadd.f32 %v459, %v462
        %464 = vst.msk [vmem:[%s457] sm:$0xff] %vm321, %v463
        %s465 = scalar_lea.vmem [#allocation5], 8
        %v466 = vld [vmem:[%s465] sm:$0xff]
        %468 = vset.pattern.permute.xlu0 0
        %469 = vperm.xlu0 %468, %v448
        %v470 = vpop.permute.xlu0 %469
        %v472 = vmul.f32 %v470, %v466
        %v473 = vpack.c.bf16 %v456, %v456
        %474 = vrot.lane.b32.xlu0 %v391, 32
        %v475 = vpop.permute.xlu0 %474
        %v477 = vsel %vm299, %v473, 0
        %v480 = vsel %vm339, %v475, 0
        %482 = vmatprep.subr.bf16.mxu0 0
        %483 = vmatpush1.bf16.msra.mxu0 0
        %484 = vmatprep.subr.bf16.mxu0 0
        %485 = vmatpush1.bf16.msra.mxu0 0
        %486 = vmatprep.subr.bf16.mxu0 0
        %487 = vmatpush1.bf16.msra.mxu0 0
        %488 = vmatprep.subr.bf16.mxu0 0
        %489 = vmatpush1.bf16.msra.mxu0 0
        %490 = vmatprep.subr.bf16.mxu0 0
        %491 = vmatpush1.bf16.msra.mxu0 0
        %492 = vmatprep.subr.bf16.mxu0 0
        %493 = vmatpush1.bf16.msra.mxu0 0
        %494 = vmatprep.subr.bf16.mxu0 0
        %495 = vmatpush1.bf16.msra.mxu0 0
        %496 = vmatprep.subr.bf16.mxu0 0
        %497 = vmatpush1.bf16.msra.mxu0 %v480
        %498 = vmatprep.subr.bf16.mxu0 0
        %499 = vmatpush2.bf16.msra.mxu0 0
        %500 = vmatprep.subr.bf16.mxu0 0
        %501 = vmatpush2.bf16.msra.mxu0 0
        %502 = vmatprep.subr.bf16.mxu0 0
        %503 = vmatpush2.bf16.msra.mxu0 0
        %504 = vmatprep.subr.bf16.mxu0 0
        %505 = vmatpush2.bf16.msra.mxu0 0
        %506 = vmatprep.subr.bf16.mxu0 0
        %507 = vmatpush2.bf16.msra.mxu0 0
        %508 = vmatprep.subr.bf16.mxu0 0
        %509 = vmatpush2.bf16.msra.mxu0 0
        %510 = vmatprep.subr.bf16.mxu0 0
        %511 = vmatpush2.bf16.msra.mxu0 0
        %512 = vmatprep.subr.bf16.mxu0 0
        %513 = vmatpush2.bf16.msra.mxu0 0
        %514 = vmatprep.mubr.bf16.mxu0 0
        %515 = vmatmul.mubr.bf16.gmra.mxu0 %v477
        %v516 = vpop.f32.mrf.mxu0
        %v517 = vadd.f32 0.0, %v516
        %v518 = vpop.f32.mrf.mxu0
        %v519 = vpop.f32.mrf.mxu0
        %v520 = vpop.f32.mrf.mxu0
        %521 = vdwg.mxu0
        %v522 = vadd.f32 %v472, %v517
        %523 = vst.msk [vmem:[%s465] sm:$0xff] %vm251, %v522
        %524 = vst.msk [vmem:[%s440] sm:$0xff] %vm321, %v445
        // Predicated region
        $region41: #{tpu_custom_call.1} parent=27 // pred_check
          %p525 = pneg %p225
        $region42: #{tpu_custom_call.1} parent=27 // pred_check_branch
          %527 = sbr.rel (%p525) target = $region44
        $region43: #{tpu_custom_call.1} parent=27 // pred_region
          %v528 = vld [vmem:[#allocation4] sm:$0xff]
          %v529 = vrcp.pop %v528
          %v530 = vld [vmem:[#allocation5] sm:$0xff]
          %532 = vset.pattern.permute.xlu0 0
          %533 = vperm.xlu0 %532, %v529
          %v534 = vpop.permute.xlu0 %533
          %v536 = vmul.f32 %v530, %v534
          %537 = vst.msk [vmem:[%s222] sm:$0xff] %vm251, %v536
          %v538 = vld [vmem:[%s457] sm:$0xff]
          %v539 = vrcp.pop %v538
          %v540 = vld [vmem:[%s465] sm:$0xff]
          %542 = vset.pattern.permute.xlu0 0
          %543 = vperm.xlu0 %542, %v539
          %v544 = vpop.permute.xlu0 %543
          %v546 = vmul.f32 %v540, %v544
          %548 = vrot.lane.b32.xlu0 %v546, 32
          %v549 = vpop.permute.xlu0 %548
          %vm551 = vcmask 523520
          %552 = vst.msk [vmem:[%s222] sm:$0xff] %vm551, %v549
        $region44: #{tpu_custom_call.1} parent=27 // pred_fallthru
          _
        %s553 = sand.u32 %s107, 1
        %s554 = scalar_lea.sflag [#allocation8], %s553
        %s555 = sand.u32 %s107, 1
        %s556 = smul.addr %s555, 8
        %s557 = scalar_lea.vmem [#allocation11], %s556
        // Predicated region
        $region45: #{tpu_custom_call.1} parent=27 // pred_check
          %p558 = pneg %p117
        $region46: #{tpu_custom_call.1} parent=27 // pred_check_branch
          %560 = sbr.rel (%p558) target = $region48
        $region47: #{tpu_custom_call.1} parent=27 // pred_region
          %s562 = ssub.s32 128, 128
          %563 = vsyncadd %s554, %s562
          %s564 = sadd.s32 %s28, %s27
          %s565 = smul.addr %s564, 128
          %s566 = scalar_lea.hbm %s2, %s565
          %s568 = sshll.u32 %s557, 4
          %s569 = int_to_ptr.vmem [resolvable:$true] %s568
          %571 = dma.vmem_to_hbm [thread:$0]  %s569, 128, %s566, %s554
        $region48: #{tpu_custom_call.1} parent=27 // pred_fallthru
          _
      $region28: #{tpu_custom_call.1} parent=5 // pred_fallthru
        _
      %p572 = scmp.le.s32.totalorder 2, %s17
      // Predicated region
      $region49: #{tpu_custom_call.1} parent=5 // pred_check
        %p573 = pneg %p572
      $region50: #{tpu_custom_call.1} parent=5 // pred_check_branch
        %575 = sbr.rel (%p573) target = $region52
      $region51: #{tpu_custom_call.1} parent=5 // pred_region
        %s576 = ssub.s32 %s17, 2
        // Predicated region
        $region53: #{tpu_custom_call.1} parent=51 // pred_check
          %p577 = pneg %p123
        $region54: #{tpu_custom_call.1} parent=51 // pred_check_branch
          %579 = sbr.rel (%p577) target = $region56
        $region55: #{tpu_custom_call.1} parent=51 // pred_region
          %s580 = sand.u32 %s108, 1
          %s581 = scalar_lea.sflag [#allocation8], %s580
          %s582 = sand.u32 %s108, 1
          %s583 = smul.addr %s582, 8
          %s584 = scalar_lea.vmem [#allocation11], %s583
          %585 = dma.done %s581, 128
        $region56: #{tpu_custom_call.1} parent=51 // pred_fallthru
          _
      $region52: #{tpu_custom_call.1} parent=5 // pred_fallthru
        _
    $region6: #{tpu_custom_call.1} parent=1 // loop_footer
      %s21 = sadd.s32 1, %s17
    $region7: #{tpu_custom_call.1} parent=1 // loop_footer_branch
      %16 = sbr.rel target = $region3
    $region8: #{tpu_custom_call.1} parent=1 // loop_exit
      _
    %586 = vsyncpa [#allocation7], 1
    %s587 = scalar_lea.sflag [#allocation7], 1
    %588 = vsyncpa %s587, 1
    %589 = vsyncpa [#allocation10], 1
    %s590 = scalar_lea.sflag [#allocation10], 1
    %591 = vsyncpa %s590, 1
    %592 = vsyncpa [#allocation8], 1
    %s593 = scalar_lea.sflag [#allocation8], 1
    %594 = vsyncpa %s593, 1

</llo_original>
